<compile_context>
chip_gen: v6e
topology: v6e:2x2x1
jax: 0.10.0
libtpu: 0.0.40
codegen_flags: <defaults>
</compile_context>

<pallas_src>
import numpy as np
import jax
import jax.numpy as jnp
from jax.experimental import pallas as pl
from jax.experimental.pallas import tpu as pltpu


def _round_up(x, m):
    return ((x + m - 1) // m) * m


# ----------------------------------------------------------------------------
# Camera / texture setup (plain-JAX glue, mirrors the PyTorch __init__)
# ----------------------------------------------------------------------------
def get_default_camera(focal_length, img_h, img_w, is_cam_batch=False):
    if not is_cam_batch:
        K = jnp.array(
            [[focal_length, 0.0, img_w / 2.0],
             [0.0, focal_length, img_h / 2.0],
             [0.0, 0.0, 1.0]], dtype=jnp.float32)[None, :, :]
        R = jnp.eye(3, dtype=jnp.float32)[None, :, :]
    else:
        bs = focal_length.shape[0]
        K = jnp.tile(jnp.eye(3, dtype=jnp.float32)[None, :, :], (bs, 1, 1))
        K = K.at[:, 0, 0].set(focal_length[:, 0])
        K = K.at[:, 1, 1].set(focal_length[:, 1])
        K = K.at[:, 0, 2].set(img_w / 2.0)
        K = K.at[:, 1, 2].set(img_h / 2.0)
        R = jnp.tile(jnp.eye(3, dtype=jnp.float32)[None, :, :], (bs, 1, 1))
    return K, R


def get_tenet_texture_synthetic(template_verts, faces):
    # 'smplpix' mode: face colors = normalized triangle centers.
    # (synthetic stand-in for the SMPL mesh; no file loads)
    tri = template_verts[faces]                       # (F, 3, 3)
    centers = tri.mean(axis=1)                        # (F, 3)
    colors = (centers - centers.min()) / np.ptp(centers)
    texture = np.zeros((1, faces.shape[0], 1, 1, 1, 3), dtype=np.float32)
    texture[0, :, 0, 0, 0, :] = colors[:, :3]
    return jnp.asarray(texture)


# ----------------------------------------------------------------------------
# Pallas kernel: batched, N-tiled pinhole projection
#   cam_ref   : (Bc_bcast=B, 16) f32 in SMEM
#               [0:9]  = (K@R) row-major, [9:12] = K@T,
#               [12:15] = R row 2,        [15]   = T_z
#   verts_ref : (1, 3, TN) f32 in VMEM (xyz on sublanes, verts on lanes)
#   out_ref   : (1, 3, TN) f32 in VMEM (rows: u, v, depth)
# ----------------------------------------------------------------------------
def _project_kernel(cam_ref, verts_ref, out_ref):
    b = pl.program_id(0)
    v = verts_ref[0]                                   # (3, TN)
    x = v[0:1, :]
    y = v[1:2, :]
    z = v[2:3, :]

    # proj = (K @ R) @ v + K @ T   (3 rows of scalar-broadcast FMAs on the VPU)
    px = cam_ref[b, 0] * x + cam_ref[b, 1] * y + cam_ref[b, 2] * z + cam_ref[b, 9]
    py = cam_ref[b, 3] * x + cam_ref[b, 4] * y + cam_ref[b, 5] * z + cam_ref[b, 10]
    pz = cam_ref[b, 6] * x + cam_ref[b, 7] * y + cam_ref[b, 8] * z + cam_ref[b, 11]
    # depth = R[2] @ v + T[2]      (4th row)
    d = cam_ref[b, 12] * x + cam_ref[b, 13] * y + cam_ref[b, 14] * z + cam_ref[b, 15]

    # Guard z ~ 0, then EUP approx reciprocal + one Newton step (keeps f32 accuracy).
    eps = jnp.float32(1e-8)
    pz_safe = jnp.where(jnp.abs(pz) < eps, jnp.where(pz >= 0.0, eps, -eps), pz)
    inv = pl.reciprocal(pz_safe, approx=True)
    inv = inv * (jnp.float32(2.0) - pz_safe * inv)

    # Single lane-dense full-tile store.
    out_ref[0] = jnp.concatenate([px * inv, py * inv, d], axis=0)    # (3, TN)


class DifferentiableRenderer:
    def __init__(self, img_h, img_w, focal_length,
                 background_color=(0.0, 0.0, 0.0), texture_mode='smplpix',
                 vertex_colors=None, face_textures=None, smpl_faces=None,
                 is_train=False, is_cam_batch=False,
                 template_verts=None):
        self.img_h = img_h
        self.img_w = img_w
        self.focal_length = focal_length
        K, R = get_default_camera(focal_length, img_h, img_w,
                                  is_cam_batch=is_cam_batch)
        if is_cam_batch:
            T = jnp.zeros((K.shape[0], 3), dtype=jnp.float32)
        else:
            T = jnp.array([[0.0, 0.0, 0.0]], dtype=jnp.float32)
        self.background_color = background_color

        if texture_mode == 'smplpix':
            face_colors = get_tenet_texture_synthetic(template_verts, smpl_faces)
            # synthetic stand-in for the .npy vertex-color file
            vertex_colors = jnp.asarray(
                (template_verts - template_verts.min())
                / np.ptp(template_verts), dtype=jnp.float32)[None, :, :3]
        else:
            vertex_colors = jnp.asarray(vertex_colors, dtype=jnp.float32)[None, ..., :3]
            face_colors = jnp.asarray(face_textures, dtype=jnp.float32)

        self.K = K
        self.R = R
        self.T = T
        self.face_colors = face_colors
        self.vertex_colors = vertex_colors
        self.smpl_faces = jnp.asarray(smpl_faces, dtype=jnp.int32)

        # One-time camera fold (host-side 3x3 work): KR = K@R, KT = K@T,
        # packed with R row 2 and T_z into a 16-scalar row per camera.
        KR = jnp.einsum('bij,bjk->bik', self.K, self.R)          # (Bc, 3, 3)
        KT = jnp.einsum('bij,bj->bi', self.K, self.T)            # (Bc, 3)
        self.cam_params = jnp.concatenate(
            [KR.reshape(KR.shape[0], 9), KT, self.R[:, 2, :], self.T[:, 2:3]],
            axis=-1).astype(jnp.float32)                         # (Bc, 16)

    def forward(self, vertices, faces=None, R=None, T=None):
        # TODO(synk): rasterization is delegated to an external renderer in the
        # reference module; forward() is NotImplementedError there as well.
        raise NotImplementedError

    def project_planar(self, verts_planar):
        """Planar, transpose-free path.

        verts_planar: (B, 3, N) f32  ->  (B, 3, N) f32 with rows (u, v, depth).
        """
        B, _, N = verts_planar.shape
        n128 = _round_up(N, 128)
        TN = min(2048, n128)                 # lane-dense tile, bounded VMEM
        N_pad = _round_up(N, TN)

        v = verts_planar.astype(jnp.float32)
        if N_pad != N:
            # pad with (1,1,1) vertices so padded lanes have z != 0
            v = jnp.pad(v, ((0, 0), (0, 0), (0, N_pad - N)), constant_values=1.0)

        cam = jnp.broadcast_to(self.cam_params, (B, 16))          # tiny, SMEM-bound

        out = pl.pallas_call(
            _project_kernel,
            out_shape=jax.ShapeDtypeStruct((B, 3, N_pad), jnp.float32),
            grid_spec=pltpu.PrefetchScalarGridSpec(
                num_scalar_prefetch=0,
                grid=(B, N_pad // TN),
                in_specs=[
                    # camera scalars: whole array resident in SMEM, no per-step DMA
                    pl.BlockSpec(memory_space=pltpu.MemorySpace.SMEM),
                    pl.BlockSpec((1, 3, TN), lambda b, n: (b, 0, n)),
                ],
                out_specs=pl.BlockSpec((1, 3, TN), lambda b, n: (b, 0, n)),
            ),
            compiler_params=pltpu.CompilerParams(
                dimension_semantics=("parallel", "parallel")),
        )(cam, v)

        if N_pad != N:
            out = out[:, :, :N]
        return out

    def project(self, vertices):
        """vertices: (B, N, 3) f32 -> (uv (B,N,2), depth (B,N), colors (B,N,3))."""
        B, N, _ = vertices.shape
        # TODO(synk): adopting the planar (B,3,N) layout end-to-end
        # (project_planar) removes these two wrapper transposes, which are the
        # remaining HBM-traffic overhead around the kernel.
        verts_t = jnp.transpose(vertices.astype(jnp.float32), (0, 2, 1))  # (B,3,N)
        out = self.project_planar(verts_t)                                # (B,3,N)

        uv = jnp.transpose(out[:, 0:2, :], (0, 2, 1))                     # (B, N, 2)
        depth = out[:, 2, :]                                              # (B, N)

        if self.vertex_colors.shape[1] != N:
            raise ValueError(
                f"runtime vertex count {N} != template vertex-color count "
                f"{self.vertex_colors.shape[1]}")
        colors = jnp.broadcast_to(self.vertex_colors, (B, N, 3))          # (B, N, 3)
        return uv, depth, colors


if __name__ == "__main__":
    # Small deterministic setup
    B, N, F = 2, 128, 64
    img_h, img_w, focal = 16, 16, 32.0

    key = jax.random.PRNGKey(0)
    k_tpl, k_faces, k_verts = jax.random.split(key, 3)

    # synthetic SMPL-like template mesh (for texture init)
    template_verts = np.asarray(
        jax.random.uniform(k_tpl, (N, 3), minval=-1.0, maxval=1.0), dtype=np.float32)
    smpl_faces = np.asarray(
        jax.random.randint(k_faces, (F, 3), 0, N), dtype=np.int32)

    renderer = DifferentiableRenderer(
        img_h, img_w, focal, texture_mode='smplpix',
        smpl_faces=smpl_faces, template_verts=template_verts)

    # batch of posed vertices, pushed in front of the camera (z > 0)
    vertices = jax.random.uniform(k_verts, (B, N, 3), jnp.float32,
                                  minval=-1.0, maxval=1.0)
    vertices = vertices.at[..., 2].add(3.0)

    uv, depth, colors = renderer.project(vertices)
    jax.block_until_ready((uv, depth, colors))

    # plain-JAX reference for the projection
    cam_ref = jnp.einsum('ij,bnj->bni', renderer.R[0], vertices) + renderer.T[0]
    proj_ref = jnp.einsum('ij,bnj->bni', renderer.K[0], cam_ref)
    uv_ref = proj_ref[..., :2] / proj_ref[..., 2:3]
    depth_ref = cam_ref[..., 2]

    np.testing.assert_allclose(np.asarray(uv), np.asarray(uv_ref),
                               rtol=1e-4, atol=1e-4)
    np.testing.assert_allclose(np.asarray(depth), np.asarray(depth_ref),
                               rtol=1e-4, atol=1e-4)
    assert colors.shape == (B, N, 3)
    print("KERNEL_OK")
</pallas_src>

<mosaic_0001>
module attributes {stable_mosaic.version = 11 : i64} {
  func.func @_project_kernel(%arg0: i32, %arg1: i32, %arg2: memref<2x16xf32, #tpu.memory_space<smem>>, %arg3: memref<1x3x128xf32, #tpu.memory_space<vmem>>, %arg4: memref<1x3x128xf32, #tpu.memory_space<vmem>>) attributes {dimension_semantics = [#tpu.dimension_semantics<parallel>, #tpu.dimension_semantics<parallel>], iteration_bounds = array<i64: 2, 1>, scalar_prefetch = 0 : i64, scratch_operands = 0 : i64, tpu.core_type = #tpu.core_type<tc>, window_params = [{transform_indices = @transform_0, window_bounds = array<i64: 2, 16>}, {transform_indices = @transform_1, window_bounds = array<i64: 1, 3, 128>}, {transform_indices = @transform_2, window_bounds = array<i64: 1, 3, 128>}]} {
    %c0 = arith.constant 0 : index
    %c0_0 = arith.constant 0 : index
    %c0_1 = arith.constant 0 : index
    %0 = vector.load %arg3[%c0, %c0_0, %c0_1] : memref<1x3x128xf32, #tpu.memory_space<vmem>>, vector<1x3x128xf32>
    %1 = vector.shape_cast %0 : vector<1x3x128xf32> to vector<3x128xf32>
    %2 = vector.extract_strided_slice %1 {offsets = [0, 0], sizes = [1, 128], strides = [1, 1]} : vector<3x128xf32> to vector<1x128xf32>
    %3 = vector.extract_strided_slice %1 {offsets = [1, 0], sizes = [1, 128], strides = [1, 1]} : vector<3x128xf32> to vector<1x128xf32>
    %4 = vector.extract_strided_slice %1 {offsets = [2, 0], sizes = [1, 128], strides = [1, 1]} : vector<3x128xf32> to vector<1x128xf32>
    %5 = arith.index_cast %arg0 : i32 to index
    %c0_2 = arith.constant 0 : index
    %6 = memref.load %arg2[%5, %c0_2] : memref<2x16xf32, #tpu.memory_space<smem>>
    %7 = vector.broadcast %6 : f32 to vector<1x128xf32>
    %8 = arith.mulf %7, %2 : vector<1x128xf32>
    %9 = arith.index_cast %arg0 : i32 to index
    %c1 = arith.constant 1 : index
    %10 = memref.load %arg2[%9, %c1] : memref<2x16xf32, #tpu.memory_space<smem>>
    %11 = vector.broadcast %10 : f32 to vector<1x128xf32>
    %12 = arith.mulf %11, %3 : vector<1x128xf32>
    %13 = arith.addf %8, %12 : vector<1x128xf32>
    %14 = arith.index_cast %arg0 : i32 to index
    %c2 = arith.constant 2 : index
    %15 = memref.load %arg2[%14, %c2] : memref<2x16xf32, #tpu.memory_space<smem>>
    %16 = vector.broadcast %15 : f32 to vector<1x128xf32>
    %17 = arith.mulf %16, %4 : vector<1x128xf32>
    %18 = arith.addf %13, %17 : vector<1x128xf32>
    %19 = arith.index_cast %arg0 : i32 to index
    %c9 = arith.constant 9 : index
    %20 = memref.load %arg2[%19, %c9] : memref<2x16xf32, #tpu.memory_space<smem>>
    %21 = vector.broadcast %20 : f32 to vector<1x128xf32>
    %22 = arith.addf %18, %21 : vector<1x128xf32>
    %23 = arith.index_cast %arg0 : i32 to index
    %c3 = arith.constant 3 : index
    %24 = memref.load %arg2[%23, %c3] : memref<2x16xf32, #tpu.memory_space<smem>>
    %25 = vector.broadcast %24 : f32 to vector<1x128xf32>
    %26 = arith.mulf %25, %2 : vector<1x128xf32>
    %27 = arith.index_cast %arg0 : i32 to index
    %c4 = arith.constant 4 : index
    %28 = memref.load %arg2[%27, %c4] : memref<2x16xf32, #tpu.memory_space<smem>>
    %29 = vector.broadcast %28 : f32 to vector<1x128xf32>
    %30 = arith.mulf %29, %3 : vector<1x128xf32>
    %31 = arith.addf %26, %30 : vector<1x128xf32>
    %32 = arith.index_cast %arg0 : i32 to index
    %c5 = arith.constant 5 : index
    %33 = memref.load %arg2[%32, %c5] : memref<2x16xf32, #tpu.memory_space<smem>>
    %34 = vector.broadcast %33 : f32 to vector<1x128xf32>
    %35 = arith.mulf %34, %4 : vector<1x128xf32>
    %36 = arith.addf %31, %35 : vector<1x128xf32>
    %37 = arith.index_cast %arg0 : i32 to index
    %c10 = arith.constant 10 : index
    %38 = memref.load %arg2[%37, %c10] : memref<2x16xf32, #tpu.memory_space<smem>>
    %39 = vector.broadcast %38 : f32 to vector<1x128xf32>
    %40 = arith.addf %36, %39 : vector<1x128xf32>
    %41 = arith.index_cast %arg0 : i32 to index
    %c6 = arith.constant 6 : index
    %42 = memref.load %arg2[%41, %c6] : memref<2x16xf32, #tpu.memory_space<smem>>
    %43 = vector.broadcast %42 : f32 to vector<1x128xf32>
    %44 = arith.mulf %43, %2 : vector<1x128xf32>
    %45 = arith.index_cast %arg0 : i32 to index
    %c7 = arith.constant 7 : index
    %46 = memref.load %arg2[%45, %c7] : memref<2x16xf32, #tpu.memory_space<smem>>
    %47 = vector.broadcast %46 : f32 to vector<1x128xf32>
    %48 = arith.mulf %47, %3 : vector<1x128xf32>
    %49 = arith.addf %44, %48 : vector<1x128xf32>
    %50 = arith.index_cast %arg0 : i32 to index
    %c8 = arith.constant 8 : index
    %51 = memref.load %arg2[%50, %c8] : memref<2x16xf32, #tpu.memory_space<smem>>
    %52 = vector.broadcast %51 : f32 to vector<1x128xf32>
    %53 = arith.mulf %52, %4 : vector<1x128xf32>
    %54 = arith.addf %49, %53 : vector<1x128xf32>
    %55 = arith.index_cast %arg0 : i32 to index
    %c11 = arith.constant 11 : index
    %56 = memref.load %arg2[%55, %c11] : memref<2x16xf32, #tpu.memory_space<smem>>
    %57 = vector.broadcast %56 : f32 to vector<1x128xf32>
    %58 = arith.addf %54, %57 : vector<1x128xf32>
    %59 = arith.index_cast %arg0 : i32 to index
    %c12 = arith.constant 12 : index
    %60 = memref.load %arg2[%59, %c12] : memref<2x16xf32, #tpu.memory_space<smem>>
    %61 = vector.broadcast %60 : f32 to vector<1x128xf32>
    %62 = arith.mulf %61, %2 : vector<1x128xf32>
    %63 = arith.index_cast %arg0 : i32 to index
    %c13 = arith.constant 13 : index
    %64 = memref.load %arg2[%63, %c13] : memref<2x16xf32, #tpu.memory_space<smem>>
    %65 = vector.broadcast %64 : f32 to vector<1x128xf32>
    %66 = arith.mulf %65, %3 : vector<1x128xf32>
    %67 = arith.addf %62, %66 : vector<1x128xf32>
    %68 = arith.index_cast %arg0 : i32 to index
    %c14 = arith.constant 14 : index
    %69 = memref.load %arg2[%68, %c14] : memref<2x16xf32, #tpu.memory_space<smem>>
    %70 = vector.broadcast %69 : f32 to vector<1x128xf32>
    %71 = arith.mulf %70, %4 : vector<1x128xf32>
    %72 = arith.addf %67, %71 : vector<1x128xf32>
    %73 = arith.index_cast %arg0 : i32 to index
    %c15 = arith.constant 15 : index
    %74 = memref.load %arg2[%73, %c15] : memref<2x16xf32, #tpu.memory_space<smem>>
    %75 = vector.broadcast %74 : f32 to vector<1x128xf32>
    %76 = arith.addf %72, %75 : vector<1x128xf32>
    %77 = math.absf %58 : vector<1x128xf32>
    %cst = arith.constant 9.99999993E-9 : f32
    %78 = vector.broadcast %cst : f32 to vector<1x128xf32>
    %79 = arith.cmpf olt, %77, %78 : vector<1x128xf32>
    %cst_3 = arith.constant 0.000000e+00 : f32
    %80 = vector.broadcast %cst_3 : f32 to vector<1x128xf32>
    %81 = arith.cmpf oge, %58, %80 : vector<1x128xf32>
    %cst_4 = arith.constant 0.000000e+00 : f32
    %cst_5 = arith.constant 9.99999993E-9 : f32
    %82 = arith.subf %cst_4, %cst_5 : f32
    %cst_6 = arith.constant 9.99999993E-9 : f32
    %83 = vector.broadcast %cst_6 : f32 to vector<1x128xf32>
    %84 = vector.broadcast %82 : f32 to vector<1x128xf32>
    %85 = arith.select %81, %83, %84 : vector<1x128xi1>, vector<1x128xf32>
    %86 = arith.select %79, %85, %58 : vector<1x128xi1>, vector<1x128xf32>
    %87 = tpu.reciprocal %86 {approx = true} : vector<1x128xf32> -> vector<1x128xf32>
    %88 = arith.mulf %86, %87 : vector<1x128xf32>
    %cst_7 = arith.constant 2.000000e+00 : f32
    %89 = vector.broadcast %cst_7 : f32 to vector<1x128xf32>
    %90 = arith.subf %89, %88 : vector<1x128xf32>
    %91 = arith.mulf %87, %90 : vector<1x128xf32>
    %92 = arith.mulf %22, %91 : vector<1x128xf32>
    %93 = arith.mulf %40, %91 : vector<1x128xf32>
    %94 = tpu.concatenate %92, %93, %76 in 0 : vector<1x128xf32>, vector<1x128xf32>, vector<1x128xf32> -> vector<3x128xf32>
    %c0_8 = arith.constant 0 : index
    %c0_9 = arith.constant 0 : index
    %c0_10 = arith.constant 0 : index
    %95 = vector.load %arg4[%c0_8, %c0_9, %c0_10] : memref<1x3x128xf32, #tpu.memory_space<vmem>>, vector<1x3x128xf32>
    %96 = vector.shape_cast %95 : vector<1x3x128xf32> to vector<3x128xf32>
    %97 = vector.shape_cast %94 : vector<3x128xf32> to vector<1x3x128xf32>
    tpu.vector_store %arg4[%c0_8, %c0_9, %c0_10], %97 {strides = array<i32>} : memref<1x3x128xf32, #tpu.memory_space<vmem>>, vector<1x3x128xf32>,
    return
  }
  func.func @transform_0(%arg0: i32, %arg1: i32) -> (i32, i32) {
    %c0_i32 = arith.constant 0 : i32
    %c0_i32_0 = arith.constant 0 : i32
    %c0_i32_1 = arith.constant 0 : i32
    return %c0_i32, %c0_i32_0 : i32, i32
  }
  func.func @transform_1(%arg0: i32, %arg1: i32) -> (i32, i32, i32) {
    %c0_i32 = arith.constant 0 : i32
    %c0_i32_0 = arith.constant 0 : i32
    return %arg0, %c0_i32, %arg1 : i32, i32, i32
  }
  func.func @transform_2(%arg0: i32, %arg1: i32) -> (i32, i32, i32) {
    %c0_i32 = arith.constant 0 : i32
    %c0_i32_0 = arith.constant 0 : i32
    return %arg0, %c0_i32, %arg1 : i32, i32, i32
  }
}

</mosaic_0001>

<llo_original>
// kernel: tpu_custom_call.1
$region0: #{tpu_custom_call.1}
  #allocation0 [shape = 'u32[]', space=smem, size = 0x4, offset = 0x4, fixed_abs, tag = 'smem constant byte address 0x4 - core index']
  #allocation1 [shape = 'u32[144,128]{1,0:T(1,128)}', space=vmem, size = 0x12000, scoped, tag = 'internal scratch']
  %s0 = inlined_call_operand.vmem [shape: f32[2,16], index: 0, kind: input, shape index: {}]
  %s1 = inlined_call_operand.vmem [shape: f32[2,3,128], index: 1, kind: input, shape index: {}]
  %s2 = inlined_call_operand.vmem [shape: f32[2,3,128], index: 2, kind: output, shape index: {}]
  %s3 = sld [smem:[#allocation0]]
  $region45: #{tpu_custom_call.1} parent=0
    _
  %s5 = ssub.s32 1, %s3
  %s6 = scalar_select 0, %s5, %s3
  $region1: #{tpu_custom_call.1} parent=0
    #allocation2 [shape = 'u8[1024]{0}', space=smem, size = 0x400, scoped, tag = 'input window, operand 0, single buffered']
    #allocation3 [shape = 's32[2]{0}', space=sflag, size = 0x8, scoped, tag = 'scoped memory for tpu_custom_call.1']
    %7 = vsyncpa [#allocation3], 0
    loop: start=0, step=1, limit=4
    $region2: #{tpu_custom_call.1} parent=1 // loop_pre_header
      _
    $region3: #{tpu_custom_call.1} parent=1 // loop_header
      %s9 = sphi 0, %s13
      %p10 = scmp.ge.s32.totalorder %s9, 4
      %s16 = sphi 0, %s28
      %s17 = sphi 0, %s24
      %s18 = sphi 0, %s16
      %s19 = sphi 0, %s17
      %s20 = sphi 0, %s18
      %s21 = sphi 0, %s19
      %s29 = sphi 0, %s29
      %s31 = sphi 0, %s29
      %s32 = sphi 0, %s31
      %s46 = sphi 0, %s32
      %s54 = sphi 0, %s56
      %s57 = sphi 0, %s54
      %s58 = sphi 0, %s57
      %s74 = sphi 0, %s58
      %s82 = sphi 0, %s84
      %s85 = sphi 0, %s82
      %s86 = sphi 0, %s85
      %s102 = sphi 0, %s86
    $region4: #{tpu_custom_call.1} parent=1 // loop_header_branch
      %12 = sbr.rel (%p10) target = $region8
    $region5: #{tpu_custom_call.1} parent=1 // loop_body
      %s14 = ssub.s32 %s9, 1
      %s15 = ssub.s32 %s9, 2
      %s22 = sadd.s32 1, %s17
      %p23 = scmp.ge.s32.totalorder %s22, 1
      %s24 = scalar_select %p23, 0, %s22
      %s25 = sadd.s32 1, %s16
      %s26 = scalar_select %p23, %s25, %s16
      %p27 = scmp.ge.s32.totalorder %s26, 2
      %s28 = scalar_select %p27, 0, %s26
      %s30 = sadd.s32 %s29, 1
      %p33 = scmp.eq.s32.totalorder %s9, 1
      %p34 = scmp.ne.s32.totalorder %s29, %s31
      %p35 = scmp.eq.s32.totalorder %s9, 0
      %p36 = por %p34, %p35
      %p37 = scmp.ne.s32.totalorder %s29, %s31
      %p38 = scmp.eq.s32.totalorder %s14, 1
      %p39 = por %p37, %p38
      %p40 = scmp.ne.s32.totalorder %s31, %s32
      %p41 = scmp.eq.s32.totalorder %s14, 0
      %p42 = por %p40, %p41
      %p43 = scmp.ne.s32.totalorder %s31, %s32
      %p44 = scmp.eq.s32.totalorder %s15, 1
      %p45 = por %p43, %p44
      %p47 = scmp.ne.s32.totalorder %s32, %s46
      %p48 = scmp.eq.s32.totalorder %s15, 0
      %p49 = por %p47, %p48
      %s50 = ssub.s32 %s16, %s28
      %s51 = ssub.s32 %s17, %s24
      %s52 = sor.u32 %s50, %s51
      %p53 = scmp.eq.s32.totalorder %s52, 0
      %s55 = sadd.s32 %s54, 1
      %s56 = scalar_select %p53, %s54, %s55
      %p59 = pneg %p53
      %p60 = scmp.eq.s32.totalorder %s9, 1
      %p61 = por %p59, %p60
      %p62 = scmp.ne.s32.totalorder %s54, %s57
      %p63 = scmp.eq.s32.totalorder %s9, 0
      %p64 = por %p62, %p63
      %p65 = scmp.ne.s32.totalorder %s54, %s57
      %p66 = scmp.eq.s32.totalorder %s14, 1
      %p67 = por %p65, %p66
      %p68 = scmp.ne.s32.totalorder %s57, %s58
      %p69 = scmp.eq.s32.totalorder %s14, 0
      %p70 = por %p68, %p69
      %p71 = scmp.ne.s32.totalorder %s57, %s58
      %p72 = scmp.eq.s32.totalorder %s15, 1
      %p73 = por %p71, %p72
      %p75 = scmp.ne.s32.totalorder %s58, %s74
      %p76 = scmp.eq.s32.totalorder %s15, 0
      %p77 = por %p75, %p76
      %s78 = ssub.s32 %s16, %s28
      %s79 = ssub.s32 %s17, %s24
      %s80 = sor.u32 %s78, %s79
      %p81 = scmp.eq.s32.totalorder %s80, 0
      %s83 = sadd.s32 %s82, 1
      %s84 = scalar_select %p81, %s82, %s83
      %p87 = pneg %p81
      %p88 = scmp.eq.s32.totalorder %s9, 1
      %p89 = por %p87, %p88
      %p90 = scmp.ne.s32.totalorder %s82, %s85
      %p91 = scmp.eq.s32.totalorder %s9, 0
      %p92 = por %p90, %p91
      %p93 = scmp.ne.s32.totalorder %s82, %s85
      %p94 = scmp.eq.s32.totalorder %s14, 1
      %p95 = por %p93, %p94
      %p96 = scmp.ne.s32.totalorder %s85, %s86
      %p97 = scmp.eq.s32.totalorder %s14, 0
      %p98 = por %p96, %p97
      %p99 = scmp.ne.s32.totalorder %s85, %s86
      %p100 = scmp.eq.s32.totalorder %s15, 1
      %p101 = por %p99, %p100
      %p103 = scmp.ne.s32.totalorder %s86, %s102
      %p104 = scmp.eq.s32.totalorder %s15, 0
      %p105 = por %p103, %p104
      %p106 = scmp.le.s32.totalorder 1, %s9
      %p107 = scmp.lt.s32.totalorder %s9, 3
      %p108 = pnand %p106, %p107
      %p109 = pneg %p108
      // Predicated region
      $region9: #{tpu_custom_call.1} parent=5 // pred_check
        _
      $region10: #{tpu_custom_call.1} parent=5 // pred_check_branch
        %111 = sbr.rel (%p108) target = $region12
      $region11: #{tpu_custom_call.1} parent=5 // pred_region
        %s112 = ssub.s32 %s9, 1
        // Predicated region
        $region13: #{tpu_custom_call.1} parent=11 // pred_check
          %p113 = pneg %p42
        $region14: #{tpu_custom_call.1} parent=11 // pred_check_branch
          %115 = sbr.rel (%p113) target = $region16
        $region15: #{tpu_custom_call.1} parent=11 // pred_region
          %s117 = ssub.s32 32, 32
          %118 = vsyncadd [#allocation3], %s117
          %s120 = sshll.u32 %s0, 4
          %s121 = int_to_ptr.vmem [resolvable:$true] %s120
          %123 = dma.vmem_to_smem %s121, 32, [#allocation2], [#allocation3]
        $region16: #{tpu_custom_call.1} parent=11 // pred_fallthru
          _
      $region12: #{tpu_custom_call.1} parent=5 // pred_fallthru
        _
      %p124 = scmp.lt.s32.totalorder %s9, 2
      // Predicated region
      $region17: #{tpu_custom_call.1} parent=5 // pred_check
        %p125 = pneg %p124
      $region18: #{tpu_custom_call.1} parent=5 // pred_check_branch
        %127 = sbr.rel (%p125) target = $region20
      $region19: #{tpu_custom_call.1} parent=5 // pred_region
        // Predicated region
        $region21: #{tpu_custom_call.1} parent=19 // pred_check
          %p128 = pneg %p64
        $region22: #{tpu_custom_call.1} parent=19 // pred_check_branch
          %130 = sbr.rel (%p128) target = $region24
        $region23: #{tpu_custom_call.1} parent=19 // pred_region
          %p131 = scmp.lt.s32.totalorder %s16, 1
          %s132 = scalar_select %p131, %s16, 1
          %p133 = scmp.lt.s32.totalorder %s17, 0
          %s134 = scalar_select %p133, %s17, 0
          %s135 = sadd.s32 %s134, %s132
          %s136 = smul.addr %s135, 4
          %s137 = scalar_lea.vmem %s1, %s136
        $region24: #{tpu_custom_call.1} parent=19 // pred_fallthru
          _
      $region20: #{tpu_custom_call.1} parent=5 // pred_fallthru
        _
      %p138 = scmp.le.s32.totalorder 1, %s9
      %p139 = scmp.lt.s32.totalorder %s9, 3
      %p140 = pnand %p138, %p139
      %p141 = pneg %p140
      // Predicated region
      $region25: #{tpu_custom_call.1} parent=5 // pred_check
        _
      $region26: #{tpu_custom_call.1} parent=5 // pred_check_branch
        %143 = sbr.rel (%p140) target = $region28
      $region27: #{tpu_custom_call.1} parent=5 // pred_region
        %s144 = ssub.s32 %s9, 1
        // Predicated region
        $region29: #{tpu_custom_call.1} parent=27 // pred_check
          %p145 = pneg %p42
        $region30: #{tpu_custom_call.1} parent=27 // pred_check_branch
          %147 = sbr.rel (%p145) target = $region32
        $region31: #{tpu_custom_call.1} parent=27 // pred_region
          %148 = dma.done [#allocation3], 32
        $region32: #{tpu_custom_call.1} parent=27 // pred_fallthru
          _
        %149 = sfence
        %p150 = pneg %p42
        %p151 = pneg %p39
        %p152 = scmp.lt.s32.totalorder %s18, 1
        %s153 = scalar_select %p152, %s18, 1
        %p154 = scmp.lt.s32.totalorder %s19, 0
        %s155 = scalar_select %p154, %s19, 0
        %s156 = sadd.s32 %s155, %s153
        %s157 = smul.addr %s156, 4
        %s158 = scalar_lea.vmem %s1, %s157
        %p159 = pneg %p70
        %p160 = pneg %p67
        %p161 = pneg %p98
        %p162 = pneg %p95
        %p163 = scmp.lt.s32.totalorder %s18, 1
        %s164 = scalar_select %p163, %s18, 1
        %p165 = scmp.lt.s32.totalorder %s19, 0
        %s166 = scalar_select %p165, %s19, 0
        %s167 = sadd.s32 %s166, %s164
        %s168 = smul.addr %s167, 4
        %s169 = scalar_lea.vmem %s2, %s168
        %p170 = scmp.lt.s32.totalorder %s18, 1
        %s171 = scalar_select %p170, %s18, 1
        %p172 = scmp.lt.s32.totalorder %s19, 0
        %s173 = scalar_select %p172, %s19, 0
        %s174 = sadd.s32 %s173, %s171
        %s175 = smul.addr %s174, 4
        %s176 = scalar_lea.vmem %s1, %s175
        %p177 = scmp.lt.s32.totalorder %s18, 1
        %s178 = scalar_select %p177, %s18, 1
        %p179 = scmp.lt.s32.totalorder %s19, 0
        %s180 = scalar_select %p179, %s19, 0
        %s181 = sadd.s32 %s180, %s178
        %s182 = smul.addr %s181, 4
        %s183 = scalar_lea.vmem %s2, %s182
        %v184 = vld [vmem:[%s176] sm:$0x7]
        %s185 = smul.u32 %s18, 128
        %s186 = sld [smem:[#allocation2 + %s185]]
        %v187 = vstv %s186
        %v188 = vmul.f32 %v187, %v184
        %s189 = sadd.s32 %s185, 1
        %s190 = sld [smem:[#allocation2 + %s189]]
        %v191 = vstv %s190
        %v192 = vmul.f32 %v191, %v184
        %v194 = vrot.slane %v192, 1
        %v196 = vadd.f32 %v188, %v194
        %s197 = sadd.s32 %s185, 2
        %s198 = sld [smem:[#allocation2 + %s197]]
        %v199 = vstv %s198
        %v200 = vmul.f32 %v199, %v184
        %v202 = vrot.slane %v200, 2
        %v204 = vadd.f32 %v196, %v202
        %s205 = sadd.s32 %s185, 9
        %s206 = sld [smem:[#allocation2 + %s205]]
        %v207 = vstv %s206
        %v208 = vadd.f32 %v204, %v207
        %s209 = sadd.s32 %s185, 3
        %s210 = sld [smem:[#allocation2 + %s209]]
        %v211 = vstv %s210
        %v212 = vmul.f32 %v211, %v184
        %s213 = sadd.s32 %s185, 4
        %s214 = sld [smem:[#allocation2 + %s213]]
        %v215 = vstv %s214
        %v216 = vmul.f32 %v215, %v184
        %v218 = vrot.slane %v216, 1
        %v220 = vadd.f32 %v212, %v218
        %s221 = sadd.s32 %s185, 5
        %s222 = sld [smem:[#allocation2 + %s221]]
        %v223 = vstv %s222
        %v224 = vmul.f32 %v223, %v184
        %v226 = vrot.slane %v224, 2
        %v228 = vadd.f32 %v220, %v226
        %s229 = sadd.s32 %s185, 10
        %s230 = sld [smem:[#allocation2 + %s229]]
        %v231 = vstv %s230
        %v232 = vadd.f32 %v228, %v231
        %s233 = sadd.s32 %s185, 6
        %s234 = sld [smem:[#allocation2 + %s233]]
        %v235 = vstv %s234
        %v236 = vmul.f32 %v235, %v184
        %s237 = sadd.s32 %s185, 7
        %s238 = sld [smem:[#allocation2 + %s237]]
        %v239 = vstv %s238
        %v240 = vmul.f32 %v239, %v184
        %v242 = vrot.slane %v240, 1
        %v244 = vadd.f32 %v236, %v242
        %s245 = sadd.s32 %s185, 8
        %s246 = sld [smem:[#allocation2 + %s245]]
        %v247 = vstv %s246
        %v248 = vmul.f32 %v247, %v184
        %v250 = vrot.slane %v248, 2
        %v252 = vadd.f32 %v244, %v250
        %s253 = sadd.s32 %s185, 11
        %s254 = sld [smem:[#allocation2 + %s253]]
        %v255 = vstv %s254
        %v256 = vadd.f32 %v252, %v255
        %s257 = sadd.s32 %s185, 12
        %s258 = sld [smem:[#allocation2 + %s257]]
        %v259 = vstv %s258
        %v260 = vmul.f32 %v259, %v184
        %s261 = sadd.s32 %s185, 13
        %s262 = sld [smem:[#allocation2 + %s261]]
        %v263 = vstv %s262
        %v264 = vmul.f32 %v263, %v184
        %v266 = vrot.slane %v264, 1
        %v268 = vadd.f32 %v260, %v266
        %s269 = sadd.s32 %s185, 14
        %s270 = sld [smem:[#allocation2 + %s269]]
        %v271 = vstv %s270
        %v272 = vmul.f32 %v271, %v184
        %v274 = vrot.slane %v272, 2
        %v276 = vadd.f32 %v268, %v274
        %s277 = sadd.s32 %s185, 15
        %s278 = sld [smem:[#allocation2 + %s277]]
        %v279 = vstv %s278
        %v280 = vadd.f32 %v276, %v279
        %v281 = vand.u32 2147483647, %v256
        %vm282 = vcmp.lt.f32.partialorder %v281, 1e-08
        %vm283 = vcmp.ge.f32.partialorder %v256, 0.0
        %v284 = vsel %vm283, 1e-08, -1e-08
        %v285 = vsel %vm282, %v284, %v256
        %v286 = vrcp.pop %v285
        %v287 = vmul.f32 %v285, %v286
        %v288 = vsub.f32 2.0, %v287
        %v289 = vmul.f32 %v286, %v288
        %v290 = vmul.f32 %v208, %v289
        %v291 = vmul.f32 %v232, %v289
        %v293 = vrot.slane %v291, 7
        %v296 = vrot.slane %v280, 6
        %vm298 = vcmask 1040384
        %v299 = vsel %vm298, %v290, %v293
        %vm300 = vcmask 1041408
        %v301 = vsel %vm300, %v299, %v296
        %302 = vst [vmem:[%s183] sm:$0x7] %v301
        %p303 = scmp.lt.s32.totalorder %s18, 1
        %s304 = scalar_select %p303, %s18, 1
        %p305 = scmp.lt.s32.totalorder %s19, 0
        %s306 = scalar_select %p305, %s19, 0
        %s307 = sadd.s32 %s306, %s304
        %s308 = smul.addr %s307, 4
        %s309 = scalar_lea.vmem %s2, %s308
        // Predicated region
        $region33: #{tpu_custom_call.1} parent=27 // pred_check
          %p310 = pneg %p95
        $region34: #{tpu_custom_call.1} parent=27 // pred_check_branch
          %312 = sbr.rel (%p310) target = $region36
        $region35: #{tpu_custom_call.1} parent=27 // pred_region
          _
        $region36: #{tpu_custom_call.1} parent=27 // pred_fallthru
          _
      $region28: #{tpu_custom_call.1} parent=5 // pred_fallthru
        _
      %p313 = scmp.le.s32.totalorder 2, %s9
      // Predicated region
      $region37: #{tpu_custom_call.1} parent=5 // pred_check
        %p314 = pneg %p313
      $region38: #{tpu_custom_call.1} parent=5 // pred_check_branch
        %316 = sbr.rel (%p314) target = $region40
      $region39: #{tpu_custom_call.1} parent=5 // pred_region
        %s317 = ssub.s32 %s9, 2
        // Predicated region
        $region41: #{tpu_custom_call.1} parent=39 // pred_check
          %p318 = pneg %p101
        $region42: #{tpu_custom_call.1} parent=39 // pred_check_branch
          %320 = sbr.rel (%p318) target = $region44
        $region43: #{tpu_custom_call.1} parent=39 // pred_region
          %p321 = scmp.lt.s32.totalorder %s20, 1
          %s322 = scalar_select %p321, %s20, 1
          %p323 = scmp.lt.s32.totalorder %s21, 0
          %s324 = scalar_select %p323, %s21, 0
          %s325 = sadd.s32 %s324, %s322
          %s326 = smul.addr %s325, 4
          %s327 = scalar_lea.vmem %s2, %s326
        $region44: #{tpu_custom_call.1} parent=39 // pred_fallthru
          _
      $region40: #{tpu_custom_call.1} parent=5 // pred_fallthru
        _
    $region6: #{tpu_custom_call.1} parent=1 // loop_footer
      %s13 = sadd.s32 1, %s9
    $region7: #{tpu_custom_call.1} parent=1 // loop_footer_branch
      %8 = sbr.rel target = $region3
    $region8: #{tpu_custom_call.1} parent=1 // loop_exit
      _
    %328 = vsyncpa [#allocation3], 1
    %s329 = scalar_lea.sflag [#allocation3], 1
    %330 = vsyncpa %s329, 1

</llo_original>
